<compile_context>
chip_gen: v7x
topology: tpu7x:2x2x1
jax: 0.10.0
libtpu: 0.0.40
codegen_flags: <defaults>
</compile_context>

<pallas_src>
import jax
import jax.numpy as jnp
from jax.experimental import pallas as pl
from jax.experimental.pallas import tpu as pltpu

_LANE = 128
_VMEM_SPEC = pl.BlockSpec(memory_space=pltpu.MemorySpace.VMEM)


# ----------------------------- Pallas kernel ------------------------------- #

def _fused_graph_head_kernel(x_low_ref, x_high_ref,
                             wtd_ref, btd_ref, wvd_ref, bvd_ref,
                             w1l_ref, w1h_ref, b1_ref,
                             w2_ref, b2_ref, w3_ref, b3_ref,
                             out_ref):
    """lin_temp/lin_vib projections + (folded) concat + MLP + SiLU, fused."""
    f32 = jnp.float32

    # Node projections, produced directly in flattened (B, N*H) layout via
    # block-diagonal weights (exactly equal to project-then-reshape).
    flat_low = (jnp.dot(x_low_ref[...], wtd_ref[...],
                        preferred_element_type=f32) + btd_ref[...])
    flat_high = (jnp.dot(x_high_ref[...], wvd_ref[...],
                         preferred_element_type=f32) + bvd_ref[...])

    # MLP layer 1: concat([flat_low, flat_high]) @ W1  ==  split-W1 sum.
    z = (jnp.dot(flat_low, w1l_ref[...], preferred_element_type=f32)
         + jnp.dot(flat_high, w1h_ref[...], preferred_element_type=f32)
         + b1_ref[...])
    z = jnp.maximum(z, 0.0)                                     # ReLU

    # MLP layer 2.
    z = jnp.maximum(jnp.dot(z, w2_ref[...],
                            preferred_element_type=f32) + b2_ref[...], 0.0)

    # Output layer (lane-padded to 128 cols) + final SiLU, all in f32.
    o = jnp.dot(z, w3_ref[...], preferred_element_type=f32) + b3_ref[...]
    out_ref[...] = o * jax.nn.sigmoid(o)                        # SiLU


# --------------------------- parameter packing ------------------------------ #

def pack_params(params, n_low, n_high):
    """One-time repack of the PyTorch-style weights into kernel-ready form."""
    (w_temp, b_temp, w_vib, b_vib, w1, b1, w2, b2, w3, b3) = params
    hid = w_temp.shape[1]
    dim_out = w3.shape[1]

    # Block-diagonal projection weights: kron(I_N, W) applies W per node while
    # emitting the flattened (B, N*H) layout directly (off-diag blocks are 0).
    w_temp_bd = jnp.kron(jnp.eye(n_low, dtype=w_temp.dtype), w_temp)
    b_temp_t = jnp.tile(b_temp, (1, n_low))
    w_vib_bd = jnp.kron(jnp.eye(n_high, dtype=w_vib.dtype), w_vib)
    b_vib_t = jnp.tile(b_vib, (1, n_high))

    # Split W1 so the concat never materializes.
    w1_low = w1[: n_low * hid, :]
    w1_high = w1[n_low * hid:, :]

    # Lane-dense output: pad dim_out up to a multiple of 128 lanes.
    out_pad = ((dim_out + _LANE - 1) // _LANE) * _LANE
    w3_p = jnp.pad(w3, ((0, 0), (0, out_pad - dim_out)))
    b3_p = jnp.pad(b3, ((0, 0), (0, out_pad - dim_out)))

    packed = (w_temp_bd, b_temp_t, w_vib_bd, b_vib_t,
              w1_low, w1_high, b1, w2, b2, w3_p, b3_p)
    return packed, dim_out


# ------------------------------ wrapper ------------------------------------- #

def graph_head_forward(x_lowf, x_highf, batch_size, packed_params, dim_out,
                       n_low, n_high):
    """Pallas implementation of GraphHead.forward (use_rnn=False, no exovar)."""
    (w_temp_bd, b_temp_t, w_vib_bd, b_vib_t,
     w1_low, w1_high, b1, w2, b2, w3_p, b3_p) = packed_params
    b = batch_size
    dim_in = x_lowf.shape[1]

    # Free row-major reshapes of the inputs: (B*N, D) -> (B, N*D).
    x_low2 = x_lowf.reshape(b, n_low * dim_in)
    x_high2 = x_highf.reshape(b, n_high * dim_in)

    out2d = pl.pallas_call(
        _fused_graph_head_kernel,
        out_shape=jax.ShapeDtypeStruct((b, w3_p.shape[1]), jnp.float32),
        in_specs=[_VMEM_SPEC] * 13,
        out_specs=_VMEM_SPEC,
        compiler_params=pltpu.CompilerParams(
            vmem_limit_bytes=32 * 1024 * 1024),
    )(x_low2, x_high2, w_temp_bd, b_temp_t, w_vib_bd, b_vib_t,
      w1_low, w1_high, b1, w2, b2, w3_p, b3_p)

    out = out2d[:, :dim_out]          # drop lane padding
    if dim_out == 1:                  # mirrors PyTorch outs.squeeze(1)
        out = jnp.squeeze(out, axis=1)
    return out


# --------------------------- parameter init --------------------------------- #

def init_params(key, dim_in, hidden_dim, n_nodes, dim_out):
    """Deterministic synthetic init (uniform +/- 1/sqrt(fan_in), zero bias).

    Weights stored as (in, out) so kernels compute y = x @ W + b
    (equivalent to PyTorch's x @ W.T + b with W of shape (out, in))."""
    def linear(k, din, dout):
        scale = 1.0 / jnp.sqrt(jnp.float32(din))
        w = jax.random.uniform(k, (din, dout), jnp.float32, -scale, scale)
        bias = jnp.zeros((1, dout), jnp.float32)
        return w, bias

    ks = jax.random.split(key, 5)
    in_dim = hidden_dim * n_nodes
    w_temp, b_temp = linear(ks[0], dim_in, hidden_dim)   # lin_temp
    w_vib, b_vib = linear(ks[1], dim_in, hidden_dim)     # lin_vib
    w1, b1 = linear(ks[2], in_dim, hidden_dim)           # MLP layer 1
    w2, b2 = linear(ks[3], hidden_dim, hidden_dim)       # MLP layer 2
    w3, b3 = linear(ks[4], hidden_dim, dim_out)          # MLP output layer
    return (w_temp, b_temp, w_vib, b_vib, w1, b1, w2, b2, w3, b3)


# ------------------------------ reference ----------------------------------- #

def _reference(x_lowf, x_highf, batch_size, params):
    (w_temp, b_temp, w_vib, b_vib, w1, b1, w2, b2, w3, b3) = params
    h_low = x_lowf @ w_temp + b_temp
    h_high = x_highf @ w_vib + b_vib
    x = jnp.concatenate([h_low.reshape(batch_size, -1),
                         h_high.reshape(batch_size, -1)], axis=1)
    z = jax.nn.relu(x @ w1 + b1)
    z = jax.nn.relu(z @ w2 + b2)
    o = z @ w3 + b3
    return jnp.squeeze(jax.nn.silu(o), axis=1)


# -------------------------------- main --------------------------------------- #

if __name__ == "__main__":
    B = 2            # batch_size
    N_LOW = 3        # low-frequency nodes per graph
    N_HIGH = 3       # high-frequency nodes per graph
    N_NODES = N_LOW + N_HIGH   # == cfg.dataset.n_nodes (aug_exovar=False)
    DIM_IN = 16
    HIDDEN = 32
    DIM_OUT = 1

    key = jax.random.PRNGKey(0)
    kx1, kx2, kp = jax.random.split(key, 3)
    x_lowf = jax.random.normal(kx1, (B * N_LOW, DIM_IN), jnp.float32)
    x_highf = jax.random.normal(kx2, (B * N_HIGH, DIM_IN), jnp.float32)
    params = init_params(kp, DIM_IN, HIDDEN, N_NODES, DIM_OUT)

    packed, dim_out = pack_params(params, N_LOW, N_HIGH)   # one-time repack
    out = graph_head_forward(x_lowf, x_highf, B, packed, dim_out, N_LOW, N_HIGH)
    out = jax.block_until_ready(out)

    ref = _reference(x_lowf, x_highf, B, params)
    assert out.shape == (B,), out.shape
    assert jnp.allclose(out, ref, atol=1e-4, rtol=1e-4), (out, ref)

    # TODO(synk): use_rnn=True (GRU/LSTM) and aug_exovar branches not exercised
    # by the default config and therefore not implemented.
    print("KERNEL_OK")
</pallas_src>

<mosaic_0001>
module attributes {stable_mosaic.version = 11 : i64} {
  func.func @_fused_graph_head_kernel(%arg0: memref<2x48xf32, #tpu.memory_space<vmem>>, %arg1: memref<2x48xf32, #tpu.memory_space<vmem>>, %arg2: memref<48x96xf32, #tpu.memory_space<vmem>>, %arg3: memref<1x96xf32, #tpu.memory_space<vmem>>, %arg4: memref<48x96xf32, #tpu.memory_space<vmem>>, %arg5: memref<1x96xf32, #tpu.memory_space<vmem>>, %arg6: memref<96x32xf32, #tpu.memory_space<vmem>>, %arg7: memref<96x32xf32, #tpu.memory_space<vmem>>, %arg8: memref<1x32xf32, #tpu.memory_space<vmem>>, %arg9: memref<32x32xf32, #tpu.memory_space<vmem>>, %arg10: memref<1x32xf32, #tpu.memory_space<vmem>>, %arg11: memref<32x128xf32, #tpu.memory_space<vmem>>, %arg12: memref<1x128xf32, #tpu.memory_space<vmem>>, %arg13: memref<2x128xf32, #tpu.memory_space<vmem>>) attributes {dimension_semantics = [], scalar_prefetch = 0 : i64, scratch_operands = 0 : i64, tpu.core_type = #tpu.core_type<tc>} {
    %c0 = arith.constant 0 : index
    %c0_0 = arith.constant 0 : index
    %0 = vector.load %arg0[%c0, %c0_0] : memref<2x48xf32, #tpu.memory_space<vmem>>, vector<2x48xf32>
    %c0_1 = arith.constant 0 : index
    %c0_2 = arith.constant 0 : index
    %1 = vector.load %arg2[%c0_1, %c0_2] : memref<48x96xf32, #tpu.memory_space<vmem>>, vector<48x96xf32>
    %cst = arith.constant dense<0.000000e+00> : vector<2x96xf32>
    %2 = tpu.matmul %0, %1, %cst {dimension_numbers = #tpu.dot_dimension_numbers<[1], [0], [0], [1], [0, 0, 1, 1], [], []>} : vector<2x48xf32>, vector<48x96xf32>, vector<2x96xf32> -> vector<2x96xf32>
    %c0_3 = arith.constant 0 : index
    %c0_4 = arith.constant 0 : index
    %3 = vector.load %arg3[%c0_3, %c0_4] : memref<1x96xf32, #tpu.memory_space<vmem>>, vector<1x96xf32>
    %4 = vector.broadcast %3 : vector<1x96xf32> to vector<2x96xf32>
    %5 = arith.addf %2, %4 : vector<2x96xf32>
    %c0_5 = arith.constant 0 : index
    %c0_6 = arith.constant 0 : index
    %6 = vector.load %arg1[%c0_5, %c0_6] : memref<2x48xf32, #tpu.memory_space<vmem>>, vector<2x48xf32>
    %c0_7 = arith.constant 0 : index
    %c0_8 = arith.constant 0 : index
    %7 = vector.load %arg4[%c0_7, %c0_8] : memref<48x96xf32, #tpu.memory_space<vmem>>, vector<48x96xf32>
    %cst_9 = arith.constant dense<0.000000e+00> : vector<2x96xf32>
    %8 = tpu.matmul %6, %7, %cst_9 {dimension_numbers = #tpu.dot_dimension_numbers<[1], [0], [0], [1], [0, 0, 1, 1], [], []>} : vector<2x48xf32>, vector<48x96xf32>, vector<2x96xf32> -> vector<2x96xf32>
    %c0_10 = arith.constant 0 : index
    %c0_11 = arith.constant 0 : index
    %9 = vector.load %arg5[%c0_10, %c0_11] : memref<1x96xf32, #tpu.memory_space<vmem>>, vector<1x96xf32>
    %10 = vector.broadcast %9 : vector<1x96xf32> to vector<2x96xf32>
    %11 = arith.addf %8, %10 : vector<2x96xf32>
    %c0_12 = arith.constant 0 : index
    %c0_13 = arith.constant 0 : index
    %12 = vector.load %arg6[%c0_12, %c0_13] : memref<96x32xf32, #tpu.memory_space<vmem>>, vector<96x32xf32>
    %cst_14 = arith.constant dense<0.000000e+00> : vector<2x32xf32>
    %13 = tpu.matmul %5, %12, %cst_14 {dimension_numbers = #tpu.dot_dimension_numbers<[1], [0], [0], [1], [0, 0, 1, 1], [], []>} : vector<2x96xf32>, vector<96x32xf32>, vector<2x32xf32> -> vector<2x32xf32>
    %c0_15 = arith.constant 0 : index
    %c0_16 = arith.constant 0 : index
    %14 = vector.load %arg7[%c0_15, %c0_16] : memref<96x32xf32, #tpu.memory_space<vmem>>, vector<96x32xf32>
    %cst_17 = arith.constant dense<0.000000e+00> : vector<2x32xf32>
    %15 = tpu.matmul %11, %14, %cst_17 {dimension_numbers = #tpu.dot_dimension_numbers<[1], [0], [0], [1], [0, 0, 1, 1], [], []>} : vector<2x96xf32>, vector<96x32xf32>, vector<2x32xf32> -> vector<2x32xf32>
    %16 = arith.addf %13, %15 : vector<2x32xf32>
    %c0_18 = arith.constant 0 : index
    %c0_19 = arith.constant 0 : index
    %17 = vector.load %arg8[%c0_18, %c0_19] : memref<1x32xf32, #tpu.memory_space<vmem>>, vector<1x32xf32>
    %18 = vector.broadcast %17 : vector<1x32xf32> to vector<2x32xf32>
    %19 = arith.addf %16, %18 : vector<2x32xf32>
    %cst_20 = arith.constant 0.000000e+00 : f32
    %20 = vector.broadcast %cst_20 : f32 to vector<2x32xf32>
    %21 = arith.maximumf %19, %20 : vector<2x32xf32>
    %c0_21 = arith.constant 0 : index
    %c0_22 = arith.constant 0 : index
    %22 = vector.load %arg9[%c0_21, %c0_22] : memref<32x32xf32, #tpu.memory_space<vmem>>, vector<32x32xf32>
    %cst_23 = arith.constant dense<0.000000e+00> : vector<2x32xf32>
    %23 = tpu.matmul %21, %22, %cst_23 {dimension_numbers = #tpu.dot_dimension_numbers<[1], [0], [0], [1], [0, 0, 1, 1], [], []>} : vector<2x32xf32>, vector<32x32xf32>, vector<2x32xf32> -> vector<2x32xf32>
    %c0_24 = arith.constant 0 : index
    %c0_25 = arith.constant 0 : index
    %24 = vector.load %arg10[%c0_24, %c0_25] : memref<1x32xf32, #tpu.memory_space<vmem>>, vector<1x32xf32>
    %25 = vector.broadcast %24 : vector<1x32xf32> to vector<2x32xf32>
    %26 = arith.addf %23, %25 : vector<2x32xf32>
    %cst_26 = arith.constant 0.000000e+00 : f32
    %27 = vector.broadcast %cst_26 : f32 to vector<2x32xf32>
    %28 = arith.maximumf %26, %27 : vector<2x32xf32>
    %c0_27 = arith.constant 0 : index
    %c0_28 = arith.constant 0 : index
    %29 = vector.load %arg11[%c0_27, %c0_28] : memref<32x128xf32, #tpu.memory_space<vmem>>, vector<32x128xf32>
    %cst_29 = arith.constant dense<0.000000e+00> : vector<2x128xf32>
    %30 = tpu.matmul %28, %29, %cst_29 {dimension_numbers = #tpu.dot_dimension_numbers<[1], [0], [0], [1], [0, 0, 1, 1], [], []>} : vector<2x32xf32>, vector<32x128xf32>, vector<2x128xf32> -> vector<2x128xf32>
    %c0_30 = arith.constant 0 : index
    %c0_31 = arith.constant 0 : index
    %31 = vector.load %arg12[%c0_30, %c0_31] : memref<1x128xf32, #tpu.memory_space<vmem>>, vector<1x128xf32>
    %32 = vector.broadcast %31 : vector<1x128xf32> to vector<2x128xf32>
    %33 = arith.addf %30, %32 : vector<2x128xf32>
    %34 = arith.negf %33 : vector<2x128xf32>
    %35 = math.exp %34 : vector<2x128xf32>
    %cst_32 = arith.constant 1.000000e+00 : f32
    %36 = vector.broadcast %cst_32 : f32 to vector<2x128xf32>
    %37 = arith.addf %36, %35 : vector<2x128xf32>
    %38 = arith.divf %36, %37 : vector<2x128xf32>
    %39 = arith.mulf %33, %38 : vector<2x128xf32>
    %c0_33 = arith.constant 0 : index
    %c0_34 = arith.constant 0 : index
    %40 = vector.load %arg13[%c0_33, %c0_34] : memref<2x128xf32, #tpu.memory_space<vmem>>, vector<2x128xf32>
    tpu.vector_store %arg13[%c0_33, %c0_34], %39 {strides = array<i32>} : memref<2x128xf32, #tpu.memory_space<vmem>>, vector<2x128xf32>,
    return
  }
}

</mosaic_0001>

<llo_original>
// kernel: tpu_custom_call.1
$region0: #{tpu_custom_call.1}
  #allocation0 [shape = 'u32[]', space=smem, size = 0x4, offset = 0x4, fixed_abs, tag = 'smem constant byte address 0x4 - core index']
  #allocation1 [shape = 'u32[144,128]{1,0:T(1,128)}', space=vmem, size = 0x12000, scoped, tag = 'internal scratch']
  %s0 = inlined_call_operand.vmem [shape: f32[2,48], index: 0, kind: input, shape index: {}]
  %s1 = inlined_call_operand.vmem [shape: f32[2,48], index: 1, kind: input, shape index: {}]
  %s2 = inlined_call_operand.vmem [shape: f32[48,96], index: 2, kind: input, shape index: {}]
  %s3 = inlined_call_operand.vmem [shape: f32[1,96], index: 3, kind: input, shape index: {}]
  %s4 = inlined_call_operand.vmem [shape: f32[48,96], index: 4, kind: input, shape index: {}]
  %s5 = inlined_call_operand.vmem [shape: f32[1,96], index: 5, kind: input, shape index: {}]
  %s6 = inlined_call_operand.vmem [shape: f32[96,32], index: 6, kind: input, shape index: {}]
  %s7 = inlined_call_operand.vmem [shape: f32[96,32], index: 7, kind: input, shape index: {}]
  %s8 = inlined_call_operand.vmem [shape: f32[1,32], index: 8, kind: input, shape index: {}]
  %s9 = inlined_call_operand.vmem [shape: f32[32,32], index: 9, kind: input, shape index: {}]
  %s10 = inlined_call_operand.vmem [shape: f32[1,32], index: 10, kind: input, shape index: {}]
  %s11 = inlined_call_operand.vmem [shape: f32[32,128], index: 11, kind: input, shape index: {}]
  %s12 = inlined_call_operand.vmem [shape: f32[1,128], index: 12, kind: input, shape index: {}]
  %s13 = inlined_call_operand.hbm [shape: f32[2,128], index: 13, kind: output, shape index: {}]
  %s14 = sld [smem:[#allocation0]]
  $region62: #{tpu_custom_call.1} parent=0
    _
  %s16 = ssub.s32 1, %s14
  %s17 = scalar_select 0, %s16, %s14
  $region1: #{tpu_custom_call.1} parent=0
    #allocation2 [shape = 'u8[1024]{0}', space=vmem, size = 0x400, scoped, tag = 'output window, operand 0, single buffered']
    #allocation3 [shape = 's32[1]{0}', space=sflag, size = 0x4, scoped, tag = 'scoped memory for tpu_custom_call.1']
    %18 = vsyncpa [#allocation3], 0
    // Predicated region
    $region2: #{tpu_custom_call.1} parent=1 // pred_check
      _
    $region3: #{tpu_custom_call.1} parent=1 // pred_check_branch
      %20 = sbr.rel (0) target = $region5
    $region4: #{tpu_custom_call.1} parent=1 // pred_region
      _
    $region5: #{tpu_custom_call.1} parent=1 // pred_fallthru
      _
    // Predicated region
    $region6: #{tpu_custom_call.1} parent=1 // pred_check
      _
    $region7: #{tpu_custom_call.1} parent=1 // pred_check_branch
      %22 = sbr.rel (0) target = $region9
    $region8: #{tpu_custom_call.1} parent=1 // pred_region
      _
    $region9: #{tpu_custom_call.1} parent=1 // pred_fallthru
      _
    // Predicated region
    $region10: #{tpu_custom_call.1} parent=1 // pred_check
      _
    $region11: #{tpu_custom_call.1} parent=1 // pred_check_branch
      %24 = sbr.rel (0) target = $region13
    $region12: #{tpu_custom_call.1} parent=1 // pred_region
      _
    $region13: #{tpu_custom_call.1} parent=1 // pred_fallthru
      _
    // Predicated region
    $region14: #{tpu_custom_call.1} parent=1 // pred_check
      _
    $region15: #{tpu_custom_call.1} parent=1 // pred_check_branch
      %26 = sbr.rel (0) target = $region17
    $region16: #{tpu_custom_call.1} parent=1 // pred_region
      _
    $region17: #{tpu_custom_call.1} parent=1 // pred_fallthru
      _
    // Predicated region
    $region18: #{tpu_custom_call.1} parent=1 // pred_check
      _
    $region19: #{tpu_custom_call.1} parent=1 // pred_check_branch
      %28 = sbr.rel (0) target = $region21
    $region20: #{tpu_custom_call.1} parent=1 // pred_region
      _
    $region21: #{tpu_custom_call.1} parent=1 // pred_fallthru
      _
    // Predicated region
    $region22: #{tpu_custom_call.1} parent=1 // pred_check
      _
    $region23: #{tpu_custom_call.1} parent=1 // pred_check_branch
      %30 = sbr.rel (0) target = $region25
    $region24: #{tpu_custom_call.1} parent=1 // pred_region
      _
    $region25: #{tpu_custom_call.1} parent=1 // pred_fallthru
      _
    // Predicated region
    $region26: #{tpu_custom_call.1} parent=1 // pred_check
      _
    $region27: #{tpu_custom_call.1} parent=1 // pred_check_branch
      %32 = sbr.rel (0) target = $region29
    $region28: #{tpu_custom_call.1} parent=1 // pred_region
      _
    $region29: #{tpu_custom_call.1} parent=1 // pred_fallthru
      _
    // Predicated region
    $region30: #{tpu_custom_call.1} parent=1 // pred_check
      _
    $region31: #{tpu_custom_call.1} parent=1 // pred_check_branch
      %34 = sbr.rel (0) target = $region33
    $region32: #{tpu_custom_call.1} parent=1 // pred_region
      _
    $region33: #{tpu_custom_call.1} parent=1 // pred_fallthru
      _
    // Predicated region
    $region34: #{tpu_custom_call.1} parent=1 // pred_check
      _
    $region35: #{tpu_custom_call.1} parent=1 // pred_check_branch
      %36 = sbr.rel (0) target = $region37
    $region36: #{tpu_custom_call.1} parent=1 // pred_region
      _
    $region37: #{tpu_custom_call.1} parent=1 // pred_fallthru
      _
    // Predicated region
    $region38: #{tpu_custom_call.1} parent=1 // pred_check
      _
    $region39: #{tpu_custom_call.1} parent=1 // pred_check_branch
      %38 = sbr.rel (0) target = $region41
    $region40: #{tpu_custom_call.1} parent=1 // pred_region
      _
    $region41: #{tpu_custom_call.1} parent=1 // pred_fallthru
      _
    // Predicated region
    $region42: #{tpu_custom_call.1} parent=1 // pred_check
      _
    $region43: #{tpu_custom_call.1} parent=1 // pred_check_branch
      %40 = sbr.rel (0) target = $region45
    $region44: #{tpu_custom_call.1} parent=1 // pred_region
      _
    $region45: #{tpu_custom_call.1} parent=1 // pred_fallthru
      _
    // Predicated region
    $region46: #{tpu_custom_call.1} parent=1 // pred_check
      _
    $region47: #{tpu_custom_call.1} parent=1 // pred_check_branch
      %42 = sbr.rel (0) target = $region49
    $region48: #{tpu_custom_call.1} parent=1 // pred_region
      _
    $region49: #{tpu_custom_call.1} parent=1 // pred_fallthru
      _
    // Predicated region
    $region50: #{tpu_custom_call.1} parent=1 // pred_check
      _
    $region51: #{tpu_custom_call.1} parent=1 // pred_check_branch
      %44 = sbr.rel (0) target = $region53
    $region52: #{tpu_custom_call.1} parent=1 // pred_region
      _
    $region53: #{tpu_custom_call.1} parent=1 // pred_fallthru
      _
    %v45 = vld [vmem:[%s0] sm:$0x3]
    %v46 = vld [vmem:[%s2] sm:$0xff]
    %v47 = vld [vmem:[%s2 + $0x8] sm:$0xff]
    %v48 = vld [vmem:[%s2 + $0x10] sm:$0xff]
    %v49 = vld [vmem:[%s2 + $0x18] sm:$0xff]
    %v50 = vld [vmem:[%s2 + $0x20] sm:$0xff]
    %v51 = vld [vmem:[%s2 + $0x28] sm:$0xff]
    %v52 = vld [vmem:[%s3] sm:$0x1]
    %v54 = vlaneseq
    %v55 = vshrl.u32 %v54, 7
    %v56 = vsub.s32 0, %v55
    %v57 = vrot.slane %v52, %v56
    %vm59 = vcmask 392192
    %v61 = vsel %vm59, %v45, 0
    %63 = vmatprep.subr.mxu0 0.0
    %64 = vmatpush1.msra.mxu0 %v46
    %65 = vmatprep.subr.mxu0 0.0
    %66 = vmatpush1.msra.mxu0 %v47
    %67 = vmatprep.subr.mxu0 0.0
    %68 = vmatpush1.msra.mxu0 %v48
    %69 = vmatprep.subr.mxu0 0.0
    %70 = vmatpush1.msra.mxu0 %v49
    %71 = vmatprep.subr.mxu0 0.0
    %72 = vmatpush1.msra.mxu0 %v50
    %73 = vmatprep.subr.mxu0 0.0
    %74 = vmatpush1.msra.mxu0 %v51
    %75 = vmatprep.subr.mxu0 0.0
    %76 = vmatpush1.msra.mxu0 0.0
    %77 = vmatprep.subr.mxu0 0.0
    %78 = vmatpush1.msra.mxu0 0.0
    %79 = vmatprep.subr.mxu0 0.0
    %80 = vmatpush1.msra.mxu0 0.0
    %81 = vmatprep.subr.mxu0 0.0
    %82 = vmatpush1.msra.mxu0 0.0
    %83 = vmatprep.subr.mxu0 0.0
    %84 = vmatpush1.msra.mxu0 0.0
    %85 = vmatprep.subr.mxu0 0.0
    %86 = vmatpush1.msra.mxu0 0.0
    %87 = vmatprep.subr.mxu0 0.0
    %88 = vmatpush1.msra.mxu0 0.0
    %89 = vmatprep.subr.mxu0 0.0
    %90 = vmatpush1.msra.mxu0 0.0
    %91 = vmatprep.subr.mxu0 0.0
    %92 = vmatpush1.msra.mxu0 0.0
    %93 = vmatprep.subr.mxu0 0.0
    %94 = vmatpush1.msra.mxu0 0.0
    %95 = vmatprep.subr.mxu0 0.0
    %96 = vmatpush1.msra.mxu0 0.0
    %97 = vmatprep.subr.mxu0 0.0
    %98 = vmatpush1.msra.mxu0 0.0
    %99 = vmatprep.subr.mxu0 0.0
    %100 = vmatpush1.msra.mxu0 0.0
    %101 = vmatprep.subr.mxu0 0.0
    %102 = vmatpush1.msra.mxu0 0.0
    %103 = vmatprep.subr.mxu0 0.0
    %104 = vmatpush1.msra.mxu0 0.0
    %105 = vmatprep.subr.mxu0 0.0
    %106 = vmatpush1.msra.mxu0 0.0
    %107 = vmatprep.subr.mxu0 0.0
    %108 = vmatpush1.msra.mxu0 0.0
    %109 = vmatprep.subr.mxu0 0.0
    %110 = vmatpush1.msra.mxu0 0.0
    %111 = vmatprep.subr.mxu0 0.0
    %112 = vmatpush1.msra.mxu0 0.0
    %113 = vmatprep.subr.mxu0 0.0
    %114 = vmatpush1.msra.mxu0 0.0
    %115 = vmatprep.subr.mxu0 0.0
    %116 = vmatpush1.msra.mxu0 0.0
    %117 = vmatprep.subr.mxu0 0.0
    %118 = vmatpush1.msra.mxu0 0.0
    %119 = vmatprep.subr.mxu0 0.0
    %120 = vmatpush1.msra.mxu0 0.0
    %121 = vmatprep.subr.mxu0 0.0
    %122 = vmatpush1.msra.mxu0 0.0
    %123 = vmatprep.subr.mxu0 0.0
    %124 = vmatpush1.msra.mxu0 0.0
    %125 = vmatprep.subr.mxu0 0.0
    %126 = vmatpush1.msra.mxu0 0.0
    %127 = vmatprep.mubr.f32.mxu0 0.0
    %128 = vmatmul.mubr.f32.gmra.mrb[0].mxu0 %v61
    %v129 = vpop.f32.mrb[0].mxu0
    %v130 = vadd.f32 %v57, %v129
    %v131 = vpop.f32.mrb[0].mxu0
    %132 = vdwg.mxu0
    %v133 = vld [vmem:[%s1] sm:$0x3]
    %v134 = vld [vmem:[%s4] sm:$0xff]
    %v135 = vld [vmem:[%s4 + $0x8] sm:$0xff]
    %v136 = vld [vmem:[%s4 + $0x10] sm:$0xff]
    %v137 = vld [vmem:[%s4 + $0x18] sm:$0xff]
    %v138 = vld [vmem:[%s4 + $0x20] sm:$0xff]
    %v139 = vld [vmem:[%s4 + $0x28] sm:$0xff]
    %v140 = vld [vmem:[%s5] sm:$0x1]
    %v142 = vlaneseq
    %v143 = vshrl.u32 %v142, 7
    %v144 = vsub.s32 0, %v143
    %v145 = vrot.slane %v140, %v144
    %v148 = vsel %vm59, %v133, 0
    %150 = vmatprep.subr.mxu0 0.0
    %151 = vmatpush1.msra.mxu0 %v134
    %152 = vmatprep.subr.mxu0 0.0
    %153 = vmatpush1.msra.mxu0 %v135
    %154 = vmatprep.subr.mxu0 0.0
    %155 = vmatpush1.msra.mxu0 %v136
    %156 = vmatprep.subr.mxu0 0.0
    %157 = vmatpush1.msra.mxu0 %v137
    %158 = vmatprep.subr.mxu0 0.0
    %159 = vmatpush1.msra.mxu0 %v138
    %160 = vmatprep.subr.mxu0 0.0
    %161 = vmatpush1.msra.mxu0 %v139
    %162 = vmatprep.subr.mxu0 0.0
    %163 = vmatpush1.msra.mxu0 0.0
    %164 = vmatprep.subr.mxu0 0.0
    %165 = vmatpush1.msra.mxu0 0.0
    %166 = vmatprep.subr.mxu0 0.0
    %167 = vmatpush1.msra.mxu0 0.0
    %168 = vmatprep.subr.mxu0 0.0
    %169 = vmatpush1.msra.mxu0 0.0
    %170 = vmatprep.subr.mxu0 0.0
    %171 = vmatpush1.msra.mxu0 0.0
    %172 = vmatprep.subr.mxu0 0.0
    %173 = vmatpush1.msra.mxu0 0.0
    %174 = vmatprep.subr.mxu0 0.0
    %175 = vmatpush1.msra.mxu0 0.0
    %176 = vmatprep.subr.mxu0 0.0
    %177 = vmatpush1.msra.mxu0 0.0
    %178 = vmatprep.subr.mxu0 0.0
    %179 = vmatpush1.msra.mxu0 0.0
    %180 = vmatprep.subr.mxu0 0.0
    %181 = vmatpush1.msra.mxu0 0.0
    %182 = vmatprep.subr.mxu0 0.0
    %183 = vmatpush1.msra.mxu0 0.0
    %184 = vmatprep.subr.mxu0 0.0
    %185 = vmatpush1.msra.mxu0 0.0
    %186 = vmatprep.subr.mxu0 0.0
    %187 = vmatpush1.msra.mxu0 0.0
    %188 = vmatprep.subr.mxu0 0.0
    %189 = vmatpush1.msra.mxu0 0.0
    %190 = vmatprep.subr.mxu0 0.0
    %191 = vmatpush1.msra.mxu0 0.0
    %192 = vmatprep.subr.mxu0 0.0
    %193 = vmatpush1.msra.mxu0 0.0
    %194 = vmatprep.subr.mxu0 0.0
    %195 = vmatpush1.msra.mxu0 0.0
    %196 = vmatprep.subr.mxu0 0.0
    %197 = vmatpush1.msra.mxu0 0.0
    %198 = vmatprep.subr.mxu0 0.0
    %199 = vmatpush1.msra.mxu0 0.0
    %200 = vmatprep.subr.mxu0 0.0
    %201 = vmatpush1.msra.mxu0 0.0
    %202 = vmatprep.subr.mxu0 0.0
    %203 = vmatpush1.msra.mxu0 0.0
    %204 = vmatprep.subr.mxu0 0.0
    %205 = vmatpush1.msra.mxu0 0.0
    %206 = vmatprep.subr.mxu0 0.0
    %207 = vmatpush1.msra.mxu0 0.0
    %208 = vmatprep.subr.mxu0 0.0
    %209 = vmatpush1.msra.mxu0 0.0
    %210 = vmatprep.subr.mxu0 0.0
    %211 = vmatpush1.msra.mxu0 0.0
    %212 = vmatprep.subr.mxu0 0.0
    %213 = vmatpush1.msra.mxu0 0.0
    %214 = vmatprep.mubr.f32.mxu0 0.0
    %215 = vmatmul.mubr.f32.gmra.mrb[0].mxu0 %v148
    %v216 = vpop.f32.mrb[0].mxu0
    %v217 = vadd.f32 %v145, %v216
    %v218 = vpop.f32.mrb[0].mxu0
    %219 = vdwg.mxu0
    %v220 = vld [vmem:[%s6] sm:$0xff]
    %v221 = vld [vmem:[%s6 + $0x8] sm:$0xff]
    %v222 = vld [vmem:[%s6 + $0x10] sm:$0xff]
    %v223 = vld [vmem:[%s6 + $0x18] sm:$0xff]
    %v224 = vld [vmem:[%s6 + $0x20] sm:$0xff]
    %v225 = vld [vmem:[%s6 + $0x28] sm:$0xff]
    %v226 = vld [vmem:[%s6 + $0x30] sm:$0xff]
    %v227 = vld [vmem:[%s6 + $0x38] sm:$0xff]
    %v228 = vld [vmem:[%s6 + $0x40] sm:$0xff]
    %v229 = vld [vmem:[%s6 + $0x48] sm:$0xff]
    %v230 = vld [vmem:[%s6 + $0x50] sm:$0xff]
    %v231 = vld [vmem:[%s6 + $0x58] sm:$0xff]
    %v232 = vld [vmem:[%s7] sm:$0xff]
    %v233 = vld [vmem:[%s7 + $0x8] sm:$0xff]
    %v234 = vld [vmem:[%s7 + $0x10] sm:$0xff]
    %v235 = vld [vmem:[%s7 + $0x18] sm:$0xff]
    %v236 = vld [vmem:[%s7 + $0x20] sm:$0xff]
    %v237 = vld [vmem:[%s7 + $0x28] sm:$0xff]
    %v238 = vld [vmem:[%s7 + $0x30] sm:$0xff]
    %v239 = vld [vmem:[%s7 + $0x38] sm:$0xff]
    %v240 = vld [vmem:[%s7 + $0x40] sm:$0xff]
    %v241 = vld [vmem:[%s7 + $0x48] sm:$0xff]
    %v242 = vld [vmem:[%s7 + $0x50] sm:$0xff]
    %v243 = vld [vmem:[%s7 + $0x58] sm:$0xff]
    %vm244 = vcmask 785408
    %v246 = vsel %vm244, %v217, 0
    %248 = vmatprep.subr.mxu0 0.0
    %249 = vmatpush1.msra.mxu0 %v232
    %250 = vmatprep.subr.mxu0 0.0
    %251 = vmatpush1.msra.mxu0 %v233
    %252 = vmatprep.subr.mxu0 0.0
    %253 = vmatpush1.msra.mxu0 %v234
    %254 = vmatprep.subr.mxu0 0.0
    %255 = vmatpush1.msra.mxu0 %v235
    %256 = vmatprep.subr.mxu0 0.0
    %257 = vmatpush1.msra.mxu0 %v236
    %258 = vmatprep.subr.mxu0 0.0
    %259 = vmatpush1.msra.mxu0 %v237
    %260 = vmatprep.subr.mxu0 0.0
    %261 = vmatpush1.msra.mxu0 %v238
    %262 = vmatprep.subr.mxu0 0.0
    %263 = vmatpush1.msra.mxu0 %v239
    %264 = vmatprep.subr.mxu0 0.0
    %265 = vmatpush1.msra.mxu0 %v240
    %266 = vmatprep.subr.mxu0 0.0
    %267 = vmatpush1.msra.mxu0 %v241
    %268 = vmatprep.subr.mxu0 0.0
    %269 = vmatpush1.msra.mxu0 %v242
    %270 = vmatprep.subr.mxu0 0.0
    %271 = vmatpush1.msra.mxu0 %v243
    %272 = vmatprep.subr.mxu0 0.0
    %273 = vmatpush1.msra.mxu0 0.0
    %274 = vmatprep.subr.mxu0 0.0
    %275 = vmatpush1.msra.mxu0 0.0
    %276 = vmatprep.subr.mxu0 0.0
    %277 = vmatpush1.msra.mxu0 0.0
    %278 = vmatprep.subr.mxu0 0.0
    %279 = vmatpush1.msra.mxu0 0.0
    %280 = vmatprep.subr.mxu0 0.0
    %281 = vmatpush1.msra.mxu0 0.0
    %282 = vmatprep.subr.mxu0 0.0
    %283 = vmatpush1.msra.mxu0 0.0
    %284 = vmatprep.subr.mxu0 0.0
    %285 = vmatpush1.msra.mxu0 0.0
    %286 = vmatprep.subr.mxu0 0.0
    %287 = vmatpush1.msra.mxu0 0.0
    %288 = vmatprep.subr.mxu0 0.0
    %289 = vmatpush1.msra.mxu0 0.0
    %290 = vmatprep.subr.mxu0 0.0
    %291 = vmatpush1.msra.mxu0 0.0
    %292 = vmatprep.subr.mxu0 0.0
    %293 = vmatpush1.msra.mxu0 0.0
    %294 = vmatprep.subr.mxu0 0.0
    %295 = vmatpush1.msra.mxu0 0.0
    %296 = vmatprep.subr.mxu0 0.0
    %297 = vmatpush1.msra.mxu0 0.0
    %298 = vmatprep.subr.mxu0 0.0
    %299 = vmatpush1.msra.mxu0 0.0
    %300 = vmatprep.subr.mxu0 0.0
    %301 = vmatpush1.msra.mxu0 0.0
    %302 = vmatprep.subr.mxu0 0.0
    %303 = vmatpush1.msra.mxu0 0.0
    %304 = vmatprep.subr.mxu0 0.0
    %305 = vmatpush1.msra.mxu0 0.0
    %306 = vmatprep.subr.mxu0 0.0
    %307 = vmatpush1.msra.mxu0 0.0
    %308 = vmatprep.subr.mxu0 0.0
    %309 = vmatpush1.msra.mxu0 0.0
    %310 = vmatprep.subr.mxu0 0.0
    %311 = vmatpush1.msra.mxu0 0.0
    %312 = vmatprep.mubr.f32.mxu0 0.0
    %313 = vmatmul.mubr.f32.gmra.mrb[0].mxu0 %v246
    %v314 = vpop.f32.mrb[0].mxu0
    %v315 = vadd.f32 0.0, %v314
    %v316 = vpop.f32.mrb[0].mxu0
    %317 = vdwg.mxu0
    %v319 = vsel %vm244, %v130, 0
    %321 = vmatprep.subr.mxu0 0.0
    %322 = vmatpush1.msra.mxu0 %v220
    %323 = vmatprep.subr.mxu0 0.0
    %324 = vmatpush1.msra.mxu0 %v221
    %325 = vmatprep.subr.mxu0 0.0
    %326 = vmatpush1.msra.mxu0 %v222
    %327 = vmatprep.subr.mxu0 0.0
    %328 = vmatpush1.msra.mxu0 %v223
    %329 = vmatprep.subr.mxu0 0.0
    %330 = vmatpush1.msra.mxu0 %v224
    %331 = vmatprep.subr.mxu0 0.0
    %332 = vmatpush1.msra.mxu0 %v225
    %333 = vmatprep.subr.mxu0 0.0
    %334 = vmatpush1.msra.mxu0 %v226
    %335 = vmatprep.subr.mxu0 0.0
    %336 = vmatpush1.msra.mxu0 %v227
    %337 = vmatprep.subr.mxu0 0.0
    %338 = vmatpush1.msra.mxu0 %v228
    %339 = vmatprep.subr.mxu0 0.0
    %340 = vmatpush1.msra.mxu0 %v229
    %341 = vmatprep.subr.mxu0 0.0
    %342 = vmatpush1.msra.mxu0 %v230
    %343 = vmatprep.subr.mxu0 0.0
    %344 = vmatpush1.msra.mxu0 %v231
    %345 = vmatprep.subr.mxu0 0.0
    %346 = vmatpush1.msra.mxu0 0.0
    %347 = vmatprep.subr.mxu0 0.0
    %348 = vmatpush1.msra.mxu0 0.0
    %349 = vmatprep.subr.mxu0 0.0
    %350 = vmatpush1.msra.mxu0 0.0
    %351 = vmatprep.subr.mxu0 0.0
    %352 = vmatpush1.msra.mxu0 0.0
    %353 = vmatprep.subr.mxu0 0.0
    %354 = vmatpush1.msra.mxu0 0.0
    %355 = vmatprep.subr.mxu0 0.0
    %356 = vmatpush1.msra.mxu0 0.0
    %357 = vmatprep.subr.mxu0 0.0
    %358 = vmatpush1.msra.mxu0 0.0
    %359 = vmatprep.subr.mxu0 0.0
    %360 = vmatpush1.msra.mxu0 0.0
    %361 = vmatprep.subr.mxu0 0.0
    %362 = vmatpush1.msra.mxu0 0.0
    %363 = vmatprep.subr.mxu0 0.0
    %364 = vmatpush1.msra.mxu0 0.0
    %365 = vmatprep.subr.mxu0 0.0
    %366 = vmatpush1.msra.mxu0 0.0
    %367 = vmatprep.subr.mxu0 0.0
    %368 = vmatpush1.msra.mxu0 0.0
    %369 = vmatprep.subr.mxu0 0.0
    %370 = vmatpush1.msra.mxu0 0.0
    %371 = vmatprep.subr.mxu0 0.0
    %372 = vmatpush1.msra.mxu0 0.0
    %373 = vmatprep.subr.mxu0 0.0
    %374 = vmatpush1.msra.mxu0 0.0
    %375 = vmatprep.subr.mxu0 0.0
    %376 = vmatpush1.msra.mxu0 0.0
    %377 = vmatprep.subr.mxu0 0.0
    %378 = vmatpush1.msra.mxu0 0.0
    %379 = vmatprep.subr.mxu0 0.0
    %380 = vmatpush1.msra.mxu0 0.0
    %381 = vmatprep.subr.mxu0 0.0
    %382 = vmatpush1.msra.mxu0 0.0
    %383 = vmatprep.subr.mxu0 0.0
    %384 = vmatpush1.msra.mxu0 0.0
    %385 = vmatprep.mubr.f32.mxu0 0.0
    %386 = vmatmul.mubr.f32.gmra.mrb[0].mxu0 %v319
    %v387 = vpop.f32.mrb[0].mxu0
    %v388 = vadd.f32 %v315, %v387
    %v389 = vpop.f32.mrb[0].mxu0
    %390 = vdwg.mxu0
    %v391 = vld [vmem:[%s8] sm:$0x1]
    %v393 = vlaneseq
    %v394 = vshrl.u32 %v393, 7
    %v395 = vsub.s32 0, %v394
    %v396 = vrot.slane %v391, %v395
    %v398 = vadd.f32 %v388, %v396
    %v399 = vmax.f32 %v398, 0.0
    %v400 = vld [vmem:[%s9] sm:$0xff]
    %v401 = vld [vmem:[%s9 + $0x8] sm:$0xff]
    %v402 = vld [vmem:[%s9 + $0x10] sm:$0xff]
    %v403 = vld [vmem:[%s9 + $0x18] sm:$0xff]
    %v404 = vld [vmem:[%s10] sm:$0x1]
    %v406 = vlaneseq
    %v407 = vshrl.u32 %v406, 7
    %v408 = vsub.s32 0, %v407
    %v409 = vrot.slane %v404, %v408
    %vm411 = vcmask 261120
    %v413 = vsel %vm411, %v399, 0
    %415 = vmatprep.subr.mxu0 0.0
    %416 = vmatpush1.msra.mxu0 %v400
    %417 = vmatprep.subr.mxu0 0.0
    %418 = vmatpush1.msra.mxu0 %v401
    %419 = vmatprep.subr.mxu0 0.0
    %420 = vmatpush1.msra.mxu0 %v402
    %421 = vmatprep.subr.mxu0 0.0
    %422 = vmatpush1.msra.mxu0 %v403
    %423 = vmatprep.subr.mxu0 0.0
    %424 = vmatpush1.msra.mxu0 0.0
    %425 = vmatprep.subr.mxu0 0.0
    %426 = vmatpush1.msra.mxu0 0.0
    %427 = vmatprep.subr.mxu0 0.0
    %428 = vmatpush1.msra.mxu0 0.0
    %429 = vmatprep.subr.mxu0 0.0
    %430 = vmatpush1.msra.mxu0 0.0
    %431 = vmatprep.subr.mxu0 0.0
    %432 = vmatpush1.msra.mxu0 0.0
    %433 = vmatprep.subr.mxu0 0.0
    %434 = vmatpush1.msra.mxu0 0.0
    %435 = vmatprep.subr.mxu0 0.0
    %436 = vmatpush1.msra.mxu0 0.0
    %437 = vmatprep.subr.mxu0 0.0
    %438 = vmatpush1.msra.mxu0 0.0
    %439 = vmatprep.subr.mxu0 0.0
    %440 = vmatpush1.msra.mxu0 0.0
    %441 = vmatprep.subr.mxu0 0.0
    %442 = vmatpush1.msra.mxu0 0.0
    %443 = vmatprep.subr.mxu0 0.0
    %444 = vmatpush1.msra.mxu0 0.0
    %445 = vmatprep.subr.mxu0 0.0
    %446 = vmatpush1.msra.mxu0 0.0
    %447 = vmatprep.subr.mxu0 0.0
    %448 = vmatpush1.msra.mxu0 0.0
    %449 = vmatprep.subr.mxu0 0.0
    %450 = vmatpush1.msra.mxu0 0.0
    %451 = vmatprep.subr.mxu0 0.0
    %452 = vmatpush1.msra.mxu0 0.0
    %453 = vmatprep.subr.mxu0 0.0
    %454 = vmatpush1.msra.mxu0 0.0
    %455 = vmatprep.subr.mxu0 0.0
    %456 = vmatpush1.msra.mxu0 0.0
    %457 = vmatprep.subr.mxu0 0.0
    %458 = vmatpush1.msra.mxu0 0.0
    %459 = vmatprep.subr.mxu0 0.0
    %460 = vmatpush1.msra.mxu0 0.0
    %461 = vmatprep.subr.mxu0 0.0
    %462 = vmatpush1.msra.mxu0 0.0
    %463 = vmatprep.subr.mxu0 0.0
    %464 = vmatpush1.msra.mxu0 0.0
    %465 = vmatprep.subr.mxu0 0.0
    %466 = vmatpush1.msra.mxu0 0.0
    %467 = vmatprep.subr.mxu0 0.0
    %468 = vmatpush1.msra.mxu0 0.0
    %469 = vmatprep.subr.mxu0 0.0
    %470 = vmatpush1.msra.mxu0 0.0
    %471 = vmatprep.subr.mxu0 0.0
    %472 = vmatpush1.msra.mxu0 0.0
    %473 = vmatprep.subr.mxu0 0.0
    %474 = vmatpush1.msra.mxu0 0.0
    %475 = vmatprep.subr.mxu0 0.0
    %476 = vmatpush1.msra.mxu0 0.0
    %477 = vmatprep.subr.mxu0 0.0
    %478 = vmatpush1.msra.mxu0 0.0
    %479 = vmatprep.mubr.f32.mxu0 0.0
    %480 = vmatmul.mubr.f32.gmra.mrb[0].mxu0 %v413
    %v481 = vpop.f32.mrb[0].mxu0
    %v482 = vadd.f32 %v409, %v481
    %v483 = vpop.f32.mrb[0].mxu0
    %484 = vdwg.mxu0
    %v485 = vmax.f32 %v482, 0.0
    %v486 = vld [vmem:[%s11] sm:$0xff]
    %v487 = vld [vmem:[%s11 + $0x8] sm:$0xff]
    %v488 = vld [vmem:[%s11 + $0x10] sm:$0xff]
    %v489 = vld [vmem:[%s11 + $0x18] sm:$0xff]
    %v490 = vld [vmem:[%s12] sm:$0x1]
    %v492 = vlaneseq
    %v493 = vshrl.u32 %v492, 7
    %v494 = vsub.s32 0, %v493
    %v495 = vrot.slane %v490, %v494
    %v498 = vsel %vm411, %v485, 0
    %500 = vmatprep.subr.mxu0 0.0
    %501 = vmatpush1.msra.mxu0 %v486
    %502 = vmatprep.subr.mxu0 0.0
    %503 = vmatpush1.msra.mxu0 %v487
    %504 = vmatprep.subr.mxu0 0.0
    %505 = vmatpush1.msra.mxu0 %v488
    %506 = vmatprep.subr.mxu0 0.0
    %507 = vmatpush1.msra.mxu0 %v489
    %508 = vmatprep.subr.mxu0 0.0
    %509 = vmatpush1.msra.mxu0 0.0
    %510 = vmatprep.subr.mxu0 0.0
    %511 = vmatpush1.msra.mxu0 0.0
    %512 = vmatprep.subr.mxu0 0.0
    %513 = vmatpush1.msra.mxu0 0.0
    %514 = vmatprep.subr.mxu0 0.0
    %515 = vmatpush1.msra.mxu0 0.0
    %516 = vmatprep.subr.mxu0 0.0
    %517 = vmatpush1.msra.mxu0 0.0
    %518 = vmatprep.subr.mxu0 0.0
    %519 = vmatpush1.msra.mxu0 0.0
    %520 = vmatprep.subr.mxu0 0.0
    %521 = vmatpush1.msra.mxu0 0.0
    %522 = vmatprep.subr.mxu0 0.0
    %523 = vmatpush1.msra.mxu0 0.0
    %524 = vmatprep.subr.mxu0 0.0
    %525 = vmatpush1.msra.mxu0 0.0
    %526 = vmatprep.subr.mxu0 0.0
    %527 = vmatpush1.msra.mxu0 0.0
    %528 = vmatprep.subr.mxu0 0.0
    %529 = vmatpush1.msra.mxu0 0.0
    %530 = vmatprep.subr.mxu0 0.0
    %531 = vmatpush1.msra.mxu0 0.0
    %532 = vmatprep.subr.mxu0 0.0
    %533 = vmatpush1.msra.mxu0 0.0
    %534 = vmatprep.subr.mxu0 0.0
    %535 = vmatpush1.msra.mxu0 0.0
    %536 = vmatprep.subr.mxu0 0.0
    %537 = vmatpush1.msra.mxu0 0.0
    %538 = vmatprep.subr.mxu0 0.0
    %539 = vmatpush1.msra.mxu0 0.0
    %540 = vmatprep.subr.mxu0 0.0
    %541 = vmatpush1.msra.mxu0 0.0
    %542 = vmatprep.subr.mxu0 0.0
    %543 = vmatpush1.msra.mxu0 0.0
    %544 = vmatprep.subr.mxu0 0.0
    %545 = vmatpush1.msra.mxu0 0.0
    %546 = vmatprep.subr.mxu0 0.0
    %547 = vmatpush1.msra.mxu0 0.0
    %548 = vmatprep.subr.mxu0 0.0
    %549 = vmatpush1.msra.mxu0 0.0
    %550 = vmatprep.subr.mxu0 0.0
    %551 = vmatpush1.msra.mxu0 0.0
    %552 = vmatprep.subr.mxu0 0.0
    %553 = vmatpush1.msra.mxu0 0.0
    %554 = vmatprep.subr.mxu0 0.0
    %555 = vmatpush1.msra.mxu0 0.0
    %556 = vmatprep.subr.mxu0 0.0
    %557 = vmatpush1.msra.mxu0 0.0
    %558 = vmatprep.subr.mxu0 0.0
    %559 = vmatpush1.msra.mxu0 0.0
    %560 = vmatprep.subr.mxu0 0.0
    %561 = vmatpush1.msra.mxu0 0.0
    %562 = vmatprep.subr.mxu0 0.0
    %563 = vmatpush1.msra.mxu0 0.0
    %564 = vmatprep.mubr.f32.mxu0 0.0
    %565 = vmatmul.mubr.f32.gmra.mrb[0].mxu0 %v498
    %v566 = vpop.f32.mrb[0].mxu0
    %v567 = vadd.f32 %v495, %v566
    %v568 = vpop.f32.mrb[0].mxu0
    %569 = vdwg.mxu0
    %v570 = vxor.u32 %v567, 2147483648
    %v571 = vmul.f32 %v570, 1.442695
    %v572 = vpow.pop %v571
    %v573 = vadd.f32 %v572, 1.0
    %v574 = vrcp.pop %v573
    %v575 = vmul.f32 1.0, %v574
    %v576 = vmul.f32 %v567, %v575
    %577 = vst [vmem:[#allocation2] sm:$0x3] %v576
    // Predicated region
    $region54: #{tpu_custom_call.1} parent=1 // pred_check
      _
    $region55: #{tpu_custom_call.1} parent=1 // pred_check_branch
      %579 = sbr.rel (0) target = $region57
    $region56: #{tpu_custom_call.1} parent=1 // pred_region
      %s581 = ssub.s32 32, 32
      %582 = vsyncadd [#allocation3], %s581
      %s584 = sshll.u32 [#allocation2], 4
      %s585 = int_to_ptr.vmem [resolvable:$true] %s584
      %587 = dma.vmem_to_hbm [thread:$0]  %s585, 32, %s13, [#allocation3]
    $region57: #{tpu_custom_call.1} parent=1 // pred_fallthru
      _
    // Predicated region
    $region58: #{tpu_custom_call.1} parent=1 // pred_check
      _
    $region59: #{tpu_custom_call.1} parent=1 // pred_check_branch
      %589 = sbr.rel (0) target = $region61
    $region60: #{tpu_custom_call.1} parent=1 // pred_region
      %590 = dma.done [#allocation3], 32
    $region61: #{tpu_custom_call.1} parent=1 // pred_fallthru
      _
    %591 = vsyncpa [#allocation3], 1

</llo_original>
